<compile_context>
chip_gen: v5e
topology: v5e:2x2
jax: 0.10.0
libtpu: 0.0.40
codegen_flags: <defaults>
</compile_context>

<pallas_src>
import functools

import jax
import jax.numpy as jnp
from jax.experimental import pallas as pl
from jax.experimental.pallas import tpu as pltpu


def _round_up(x, m):
    return ((x + m - 1) // m) * m


def _linear1_kernel(x_ref, w_ref, t_ref, o_ref, *, mxu_dtype):
    # x_ref: (C_in, tl)   w_ref: (tc, C_in)   t_ref: (tc, 1)   o_ref: (tc, tl)
    x = x_ref[...]
    if mxu_dtype is not None:
        x = x.astype(mxu_dtype)          # cast on vregs; x stays f32 in HBM/VMEM
    y = jnp.dot(w_ref[...], x, preferred_element_type=jnp.float32)
    y = y + t_ref[...]                   # folded conv-bias + BN shift (f32)
    o_ref[...] = jnp.maximum(y, 0.0).astype(o_ref.dtype)


def _vmem_estimate(Cin, tc, tl, w_bpe, single_buf_w):
    cin_s = _round_up(Cin, 8)            # sublane padding of the f32 x tile
    cin_l = _round_up(Cin, 128)          # lane padding of the weight tile
    tc_s = _round_up(tc, 16)
    tl_l = _round_up(tl, 128)
    n_w = 1 if single_buf_w else 2
    return (2 * cin_s * tl_l * 4         # x tile (double-buffered, f32)
            + 2 * tc_s * tl_l * 4        # out tile (double-buffered, f32)
            + n_w * tc_s * cin_l * w_bpe  # weight tile(s)
            + n_w * tc_s * 128 * 4)      # shift tile(s)


def _tpu_vmem_capacity():
    cap = 64 * 1024 * 1024               # conservative default (v7x per-core)
    try:
        info = pltpu.get_tpu_info()
        cap = int(getattr(info, "vmem_capacity_bytes", cap) or cap)
    except Exception:
        pass
    return cap


def _select_tiles(N, Cin, Cout, L, w_bpe, budget, tl_req, tc_req):
    # ---- Cout tile ---------------------------------------------------------
    if tc_req is not None:
        tc = max(1, min(tc_req, Cout))
    elif Cout >= 1024:
        tc = 256                          # bound weight/out slabs, more parallel steps
    else:
        tc = Cout

    # ---- length tile (lane dim) ---------------------------------------------
    target = 2048
    if tl_req is not None:
        tl = max(1, min(tl_req, L))
    elif L <= target:
        tl = L                            # single tile spans the whole length
    else:
        tl = target
        for cand in range(target, 127, -128):   # prefer a divisor -> no ragged tail
            if L % cand == 0:
                tl = cand
                break

    def est(tl_, tc_):
        return _vmem_estimate(Cin, tc_, tl_, w_bpe, single_buf_w=True)

    # ---- shrink to the generation's VMEM budget ------------------------------
    while est(tl, tc) > budget and tl > 256:
        tl = max(256, _round_up(tl // 2, 128))
    if est(tl, tc) > budget and tc > 256:
        tc = 256
    while est(tl, tc) > budget and tl > 128:
        tl = max(128, _round_up(tl // 2, 128))

    # ---- keep >= 2 parallel grid steps (megacore / v7x 2-TC) ------------------
    if (tl_req is None and L >= 256
            and N * pl.cdiv(Cout, tc) * pl.cdiv(L, tl) == 1):
        tl = _round_up(pl.cdiv(L, 2), 128)

    return tl, tc


def linear1_layer_pallas(x_ncl, params, *, tl=None, tc=None, mxu_dtype=None):
    """Fused Conv1d(k=1) -> BatchNorm1d (eval) -> ReLU.

    x_ncl: (N, C_in, L) float32, PyTorch NCL layout consumed directly.
    params: w (C_out, C_in) [Conv1d k=1 weight squeezed], b (C_out,),
            bn_gamma/bn_beta/bn_mean/bn_var (C_out,)  (BatchNorm1d eval mode).
    Returns (N, C_out, L) float32.
    """
    N, Cin, L = x_ncl.shape
    w = params["w"]
    Cout = w.shape[0]
    eps = 1e-5

    # --- fold BN (eval) + conv bias at trace time:  y = (w*s) @ x + t ----------
    s = params["bn_gamma"] / jnp.sqrt(params["bn_var"] + eps)          # (C_out,)
    w_scaled = (w * s[:, None]).astype(jnp.float32)                    # (C_out, C_in)
    t = (params["bn_beta"] + (params["b"] - params["bn_mean"]) * s)    # (C_out,)
    t = t.reshape(Cout, 1).astype(jnp.float32)

    if mxu_dtype is not None:
        # Only the small weight is cast at trace time; the activation cast happens
        # inside the kernel, so no extra HBM pass over x is introduced.
        w_scaled = w_scaled.astype(mxu_dtype)
    w_bpe = jnp.dtype(w_scaled.dtype).itemsize

    # --- generation-aware tiling / VMEM budget ---------------------------------
    cap = _tpu_vmem_capacity()
    tl, tc = _select_tiles(N, Cin, Cout, L, w_bpe, int(cap * 0.6), tl, tc)
    n_l = pl.cdiv(L, tl)
    n_c = pl.cdiv(Cout, tc)

    est = _vmem_estimate(Cin, tc, tl, w_bpe, single_buf_w=(n_c == 1))
    vmem_limit = None
    if est > 12 * 1024 * 1024:            # above this, v5e's 16 MiB default is at risk
        vmem_limit = int(min(cap * 0.85, max(2 * est, 32 * 1024 * 1024)))

    kernel = functools.partial(_linear1_kernel, mxu_dtype=mxu_dtype)

    def run(single_buffer_weights):
        # Grid-invariant weight/shift (index_map always (c=0, 0)) only need one buffer.
        w_mode = pl.Buffered(1) if single_buffer_weights else None
        return pl.pallas_call(
            kernel,
            out_shape=jax.ShapeDtypeStruct((N, Cout, L), jnp.float32),
            grid_spec=pltpu.PrefetchScalarGridSpec(
                num_scalar_prefetch=0,
                grid=(N, n_c, n_l),
                in_specs=[
                    pl.BlockSpec((pl.Squeezed(), Cin, tl),
                                 lambda n, c, l: (n, 0, l)),               # x
                    pl.BlockSpec((tc, Cin), lambda n, c, l: (c, 0),
                                 pipeline_mode=w_mode),                    # w * s
                    pl.BlockSpec((tc, 1), lambda n, c, l: (c, 0),
                                 pipeline_mode=w_mode),                    # shift
                ],
                out_specs=pl.BlockSpec((pl.Squeezed(), tc, tl),
                                       lambda n, c, l: (n, c, l)),
            ),
            compiler_params=pltpu.CompilerParams(
                dimension_semantics=("parallel", "parallel", "parallel"),
                vmem_limit_bytes=vmem_limit),
        )(x_ncl, w_scaled, t)

    if n_c == 1:
        try:
            return run(single_buffer_weights=True)
        except Exception:
            # Fallback in case this Pallas build rejects buffer_count=1.
            return run(single_buffer_weights=False)
    return run(single_buffer_weights=False)


def _reference(x_ncl, params):
    """Pure-JAX reference of the PyTorch forward (Conv1d k=1 -> BN eval -> ReLU)."""
    eps = 1e-5
    y = jnp.einsum("oc,ncl->nol", params["w"], x_ncl) + params["b"][None, :, None]
    y = (y - params["bn_mean"][None, :, None]) / jnp.sqrt(
        params["bn_var"][None, :, None] + eps)
    y = y * params["bn_gamma"][None, :, None] + params["bn_beta"][None, :, None]
    return jnp.maximum(y, 0.0)


def _make_params(key, cin, cout):
    keys = jax.random.split(key, 6)
    return {
        "w": jax.random.normal(keys[0], (cout, cin), dtype=jnp.float32) * 0.2,
        "b": jax.random.normal(keys[1], (cout,), dtype=jnp.float32) * 0.1,
        "bn_gamma": 1.0 + 0.1 * jax.random.normal(keys[2], (cout,), dtype=jnp.float32),
        "bn_beta": 0.1 * jax.random.normal(keys[3], (cout,), dtype=jnp.float32),
        "bn_mean": 0.1 * jax.random.normal(keys[4], (cout,), dtype=jnp.float32),
        "bn_var": jnp.abs(1.0 + 0.1 * jax.random.normal(keys[5], (cout,), dtype=jnp.float32)),
    }


if __name__ == "__main__":
    # TODO(synk): BatchNorm1d training-mode (batch statistics + running-stat update)
    # is not implemented; the kernel reproduces eval-mode BN semantics.
    key = jax.random.PRNGKey(0)
    k0, k1, k2 = jax.random.split(key, 3)

    N, Cin, Cout, L = 2, 8, 16, 16
    params = _make_params(k0, Cin, Cout)

    # 1) Small shape, single length tile (block == full array dims).
    x = jax.random.normal(k1, (N, Cin, L), dtype=jnp.float32)
    out = jax.block_until_ready(linear1_layer_pallas(x, params))
    ref = _reference(x, params)
    assert out.shape == (N, Cout, L)
    assert jnp.allclose(out, ref, atol=1e-4, rtol=1e-4)

    # 2) Multi-step grid with a ragged last length tile (L % tl != 0) -- no pad pass.
    L2 = 200
    x2 = jax.random.normal(k2, (N, Cin, L2), dtype=jnp.float32)
    out2 = jax.block_until_ready(linear1_layer_pallas(x2, params, tl=128))
    ref2 = _reference(x2, params)
    assert out2.shape == (N, Cout, L2)
    assert jnp.allclose(out2, ref2, atol=1e-4, rtol=1e-4)

    # 3) Opt-in bf16 MXU path (cast happens inside the kernel; f32 accumulation).
    out3 = jax.block_until_ready(
        linear1_layer_pallas(x2, params, tl=128, mxu_dtype=jnp.bfloat16))
    assert out3.shape == (N, Cout, L2)
    assert jnp.allclose(out3, ref2, atol=5e-2, rtol=5e-2)

    print("KERNEL_OK")
</pallas_src>

<mosaic_0001>
module attributes {stable_mosaic.version = 11 : i64} {
  func.func @_linear1_kernel(%arg0: i32, %arg1: i32, %arg2: i32, %arg3: memref<1x8x16xf32, #tpu.memory_space<vmem>>, %arg4: memref<16x8xf32, #tpu.memory_space<vmem>>, %arg5: memref<16x1xf32, #tpu.memory_space<vmem>>, %arg6: memref<1x16x16xf32, #tpu.memory_space<vmem>>) attributes {dimension_semantics = [#tpu.dimension_semantics<parallel>, #tpu.dimension_semantics<parallel>, #tpu.dimension_semantics<parallel>], iteration_bounds = array<i64: 2, 1, 1>, scalar_prefetch = 0 : i64, scratch_operands = 0 : i64, tpu.core_type = #tpu.core_type<tc>, window_params = [{transform_indices = @transform_0, window_bounds = array<i64: 1, 8, 16>}, {pipeline_mode = #tpu.pipeline_mode<synchronous>, transform_indices = @transform_1, window_bounds = array<i64: 16, 8>}, {pipeline_mode = #tpu.pipeline_mode<synchronous>, transform_indices = @transform_2, window_bounds = array<i64: 16, 1>}, {transform_indices = @transform_3, window_bounds = array<i64: 1, 16, 16>}]} {
    %c0 = arith.constant 0 : index
    %c0_0 = arith.constant 0 : index
    %c0_1 = arith.constant 0 : index
    %0 = vector.load %arg3[%c0, %c0_0, %c0_1] : memref<1x8x16xf32, #tpu.memory_space<vmem>>, vector<1x8x16xf32>
    %1 = vector.shape_cast %0 : vector<1x8x16xf32> to vector<8x16xf32>
    %c0_2 = arith.constant 0 : index
    %c0_3 = arith.constant 0 : index
    %2 = vector.load %arg4[%c0_2, %c0_3] : memref<16x8xf32, #tpu.memory_space<vmem>>, vector<16x8xf32>
    %cst = arith.constant dense<0.000000e+00> : vector<16x16xf32>
    %3 = tpu.matmul %2, %1, %cst {dimension_numbers = #tpu.dot_dimension_numbers<[1], [0], [0], [1], [0, 0, 1, 1], [], []>} : vector<16x8xf32>, vector<8x16xf32>, vector<16x16xf32> -> vector<16x16xf32>
    %c0_4 = arith.constant 0 : index
    %c0_5 = arith.constant 0 : index
    %4 = vector.load %arg5[%c0_4, %c0_5] : memref<16x1xf32, #tpu.memory_space<vmem>>, vector<16x1xf32>
    %5 = vector.broadcast %4 : vector<16x1xf32> to vector<16x16xf32>
    %6 = arith.addf %3, %5 : vector<16x16xf32>
    %cst_6 = arith.constant 0.000000e+00 : f32
    %7 = vector.broadcast %cst_6 : f32 to vector<16x16xf32>
    %8 = arith.maximumf %6, %7 : vector<16x16xf32>
    %c0_7 = arith.constant 0 : index
    %c0_8 = arith.constant 0 : index
    %c0_9 = arith.constant 0 : index
    %9 = vector.load %arg6[%c0_7, %c0_8, %c0_9] : memref<1x16x16xf32, #tpu.memory_space<vmem>>, vector<1x16x16xf32>
    %10 = vector.shape_cast %9 : vector<1x16x16xf32> to vector<16x16xf32>
    %11 = vector.shape_cast %8 : vector<16x16xf32> to vector<1x16x16xf32>
    tpu.vector_store %arg6[%c0_7, %c0_8, %c0_9], %11 {strides = array<i32>} : memref<1x16x16xf32, #tpu.memory_space<vmem>>, vector<1x16x16xf32>,
    return
  }
  func.func @transform_0(%arg0: i32, %arg1: i32, %arg2: i32) -> (i32, i32, i32) {
    %c0_i32 = arith.constant 0 : i32
    %c0_i32_0 = arith.constant 0 : i32
    return %arg0, %c0_i32, %arg2 : i32, i32, i32
  }
  func.func @transform_1(%arg0: i32, %arg1: i32, %arg2: i32) -> (i32, i32) {
    %c0_i32 = arith.constant 0 : i32
    %c0_i32_0 = arith.constant 0 : i32
    return %arg1, %c0_i32 : i32, i32
  }
  func.func @transform_2(%arg0: i32, %arg1: i32, %arg2: i32) -> (i32, i32) {
    %c0_i32 = arith.constant 0 : i32
    %c0_i32_0 = arith.constant 0 : i32
    return %arg1, %c0_i32 : i32, i32
  }
  func.func @transform_3(%arg0: i32, %arg1: i32, %arg2: i32) -> (i32, i32, i32) {
    %c0_i32 = arith.constant 0 : i32
    return %arg0, %arg1, %arg2 : i32, i32, i32
  }
}

module attributes {stable_mosaic.version = 11 : i64} {
  func.func @_linear1_kernel(%arg0: i32, %arg1: i32, %arg2: i32, %arg3: memref<1x8x16xf32, #tpu.memory_space<vmem>>, %arg4: memref<16x8xf32, #tpu.memory_space<vmem>>, %arg5: memref<16x1xf32, #tpu.memory_space<vmem>>, %arg6: memref<1x16x16xf32, #tpu.memory_space<vmem>>) attributes {dimension_semantics = [#tpu.dimension_semantics<parallel>, #tpu.dimension_semantics<parallel>, #tpu.dimension_semantics<parallel>], iteration_bounds = array<i64: 2, 1, 1>, scalar_prefetch = 0 : i64, scratch_operands = 0 : i64, tpu.core_type = #tpu.core_type<tc>, window_params = [{transform_indices = @transform_0, window_bounds = array<i64: 1, 8, 16>}, {transform_indices = @transform_1, window_bounds = array<i64: 16, 8>}, {transform_indices = @transform_2, window_bounds = array<i64: 16, 1>}, {transform_indices = @transform_3, window_bounds = array<i64: 1, 16, 16>}]} {
    %c0 = arith.constant 0 : index
    %c0_0 = arith.constant 0 : index
    %c0_1 = arith.constant 0 : index
    %0 = vector.load %arg3[%c0, %c0_0, %c0_1] : memref<1x8x16xf32, #tpu.memory_space<vmem>>, vector<1x8x16xf32>
    %1 = vector.shape_cast %0 : vector<1x8x16xf32> to vector<8x16xf32>
    %c0_2 = arith.constant 0 : index
    %c0_3 = arith.constant 0 : index
    %2 = vector.load %arg4[%c0_2, %c0_3] : memref<16x8xf32, #tpu.memory_space<vmem>>, vector<16x8xf32>
    %cst = arith.constant dense<0.000000e+00> : vector<16x16xf32>
    %3 = tpu.matmul %2, %1, %cst {dimension_numbers = #tpu.dot_dimension_numbers<[1], [0], [0], [1], [0, 0, 1, 1], [], []>} : vector<16x8xf32>, vector<8x16xf32>, vector<16x16xf32> -> vector<16x16xf32>
    %c0_4 = arith.constant 0 : index
    %c0_5 = arith.constant 0 : index
    %4 = vector.load %arg5[%c0_4, %c0_5] : memref<16x1xf32, #tpu.memory_space<vmem>>, vector<16x1xf32>
    %5 = vector.broadcast %4 : vector<16x1xf32> to vector<16x16xf32>
    %6 = arith.addf %3, %5 : vector<16x16xf32>
    %cst_6 = arith.constant 0.000000e+00 : f32
    %7 = vector.broadcast %cst_6 : f32 to vector<16x16xf32>
    %8 = arith.maximumf %6, %7 : vector<16x16xf32>
    %c0_7 = arith.constant 0 : index
    %c0_8 = arith.constant 0 : index
    %c0_9 = arith.constant 0 : index
    %9 = vector.load %arg6[%c0_7, %c0_8, %c0_9] : memref<1x16x16xf32, #tpu.memory_space<vmem>>, vector<1x16x16xf32>
    %10 = vector.shape_cast %9 : vector<1x16x16xf32> to vector<16x16xf32>
    %11 = vector.shape_cast %8 : vector<16x16xf32> to vector<1x16x16xf32>
    tpu.vector_store %arg6[%c0_7, %c0_8, %c0_9], %11 {strides = array<i32>} : memref<1x16x16xf32, #tpu.memory_space<vmem>>, vector<1x16x16xf32>,
    return
  }
  func.func @transform_0(%arg0: i32, %arg1: i32, %arg2: i32) -> (i32, i32, i32) {
    %c0_i32 = arith.constant 0 : i32
    %c0_i32_0 = arith.constant 0 : i32
    return %arg0, %c0_i32, %arg2 : i32, i32, i32
  }
  func.func @transform_1(%arg0: i32, %arg1: i32, %arg2: i32) -> (i32, i32) {
    %c0_i32 = arith.constant 0 : i32
    %c0_i32_0 = arith.constant 0 : i32
    return %arg1, %c0_i32 : i32, i32
  }
  func.func @transform_2(%arg0: i32, %arg1: i32, %arg2: i32) -> (i32, i32) {
    %c0_i32 = arith.constant 0 : i32
    %c0_i32_0 = arith.constant 0 : i32
    return %arg1, %c0_i32 : i32, i32
  }
  func.func @transform_3(%arg0: i32, %arg1: i32, %arg2: i32) -> (i32, i32, i32) {
    %c0_i32 = arith.constant 0 : i32
    return %arg0, %arg1, %arg2 : i32, i32, i32
  }
}

</mosaic_0001>

<llo_original>
// kernel: tpu_custom_call.1
$region0: #{tpu_custom_call.1}
  #allocation0 [shape = 'u32[]', space=smem, size = 0x4, offset = 0x4, fixed_abs, tag = 'smem constant byte address 0x4 - core index']
  #allocation1 [shape = 'u32[72,128]{1,0:T(1,128)}', space=vmem, size = 0x9000, scoped, tag = 'internal scratch']
  %s0 = inlined_call_operand.vmem [shape: f32[2,8,16], index: 0, kind: input, shape index: {}]
  %s1 = inlined_call_operand.vmem [shape: f32[16,8], index: 1, kind: input, shape index: {}]
  %s2 = inlined_call_operand.vmem [shape: f32[16,1], index: 2, kind: input, shape index: {}]
  %s3 = inlined_call_operand.hbm [shape: f32[2,16,16], index: 3, kind: output, shape index: {}]
  %s4 = sld [smem:[#allocation0]]
  $region45: #{tpu_custom_call.1} parent=0
    _
  %s6 = ssub.s32 1, %s4
  %s7 = scalar_select 0, %s6, %s4
  $region1: #{tpu_custom_call.1} parent=0
    #allocation2 [shape = 'u8[16384]{0}', space=vmem, size = 0x4000, scoped, tag = 'output window, operand 0']
    #allocation3 [shape = 's32[2]{0}', space=sflag, size = 0x8, scoped, tag = 'scoped memory for tpu_custom_call.1']
    %8 = vsyncpa [#allocation3], 0
    %s9 = scalar_lea.sflag [#allocation3], 1
    %10 = vsyncpa %s9, 0
    loop: start=0, step=1, limit=4
    $region2: #{tpu_custom_call.1} parent=1 // loop_pre_header
      _
    $region3: #{tpu_custom_call.1} parent=1 // loop_header
      %s12 = sphi 0, %s16
      %p13 = scmp.ge.s32.totalorder %s12, 4
      %s19 = sphi 0, %s38
      %s20 = sphi 0, %s34
      %s21 = sphi 0, %s30
      %s22 = sphi 0, %s19
      %s23 = sphi 0, %s20
      %s24 = sphi 0, %s21
      %s25 = sphi 0, %s22
      %s26 = sphi 0, %s23
      %s27 = sphi 0, %s24
      %s43 = sphi 0, %s45
      %s46 = sphi 0, %s43
      %s47 = sphi 0, %s46
      %s63 = sphi 0, %s47
      %s69 = sphi 0, %s71
      %s72 = sphi 0, %s69
      %s73 = sphi 0, %s72
      %s89 = sphi 0, %s73
      %s95 = sphi 0, %s97
      %s98 = sphi 0, %s95
      %s99 = sphi 0, %s98
      %s115 = sphi 0, %s99
      %s125 = sphi 0, %s127
      %s128 = sphi 0, %s125
      %s129 = sphi 0, %s128
      %s145 = sphi 0, %s129
    $region4: #{tpu_custom_call.1} parent=1 // loop_header_branch
      %15 = sbr.rel (%p13) target = $region8
    $region5: #{tpu_custom_call.1} parent=1 // loop_body
      %s17 = ssub.s32 %s12, 1
      %s18 = ssub.s32 %s12, 2
      %s28 = sadd.s32 1, %s21
      %p29 = scmp.ge.s32.totalorder %s28, 1
      %s30 = scalar_select %p29, 0, %s28
      %s31 = sadd.s32 1, %s20
      %s32 = scalar_select %p29, %s31, %s20
      %p33 = scmp.ge.s32.totalorder %s32, 1
      %s34 = scalar_select %p33, 0, %s32
      %s35 = sadd.s32 1, %s19
      %s36 = scalar_select %p33, %s35, %s19
      %p37 = scmp.ge.s32.totalorder %s36, 2
      %s38 = scalar_select %p37, 0, %s36
      %s39 = ssub.s32 %s19, %s38
      %s40 = ssub.s32 %s21, %s30
      %s41 = sor.u32 %s39, %s40
      %p42 = scmp.eq.s32.totalorder %s41, 0
      %s44 = sadd.s32 %s43, 1
      %s45 = scalar_select %p42, %s43, %s44
      %p48 = pneg %p42
      %p49 = scmp.eq.s32.totalorder %s12, 1
      %p50 = por %p48, %p49
      %p51 = scmp.ne.s32.totalorder %s43, %s46
      %p52 = scmp.eq.s32.totalorder %s12, 0
      %p53 = por %p51, %p52
      %p54 = scmp.ne.s32.totalorder %s43, %s46
      %p55 = scmp.eq.s32.totalorder %s17, 1
      %p56 = por %p54, %p55
      %p57 = scmp.ne.s32.totalorder %s46, %s47
      %p58 = scmp.eq.s32.totalorder %s17, 0
      %p59 = por %p57, %p58
      %p60 = scmp.ne.s32.totalorder %s46, %s47
      %p61 = scmp.eq.s32.totalorder %s18, 1
      %p62 = por %p60, %p61
      %p64 = scmp.ne.s32.totalorder %s47, %s63
      %p65 = scmp.eq.s32.totalorder %s18, 0
      %p66 = por %p64, %p65
      %s67 = ssub.s32 %s20, %s34
      %p68 = scmp.eq.s32.totalorder %s67, 0
      %s70 = sadd.s32 %s69, 1
      %s71 = scalar_select %p68, %s69, %s70
      %p74 = pneg %p68
      %p75 = scmp.eq.s32.totalorder %s12, 1
      %p76 = por %p74, %p75
      %p77 = scmp.ne.s32.totalorder %s69, %s72
      %p78 = scmp.eq.s32.totalorder %s12, 0
      %p79 = por %p77, %p78
      %p80 = scmp.ne.s32.totalorder %s69, %s72
      %p81 = scmp.eq.s32.totalorder %s17, 1
      %p82 = por %p80, %p81
      %p83 = scmp.ne.s32.totalorder %s72, %s73
      %p84 = scmp.eq.s32.totalorder %s17, 0
      %p85 = por %p83, %p84
      %p86 = scmp.ne.s32.totalorder %s72, %s73
      %p87 = scmp.eq.s32.totalorder %s18, 1
      %p88 = por %p86, %p87
      %p90 = scmp.ne.s32.totalorder %s73, %s89
      %p91 = scmp.eq.s32.totalorder %s18, 0
      %p92 = por %p90, %p91
      %s93 = ssub.s32 %s20, %s34
      %p94 = scmp.eq.s32.totalorder %s93, 0
      %s96 = sadd.s32 %s95, 1
      %s97 = scalar_select %p94, %s95, %s96
      %p100 = pneg %p94
      %p101 = scmp.eq.s32.totalorder %s12, 1
      %p102 = por %p100, %p101
      %p103 = scmp.ne.s32.totalorder %s95, %s98
      %p104 = scmp.eq.s32.totalorder %s12, 0
      %p105 = por %p103, %p104
      %p106 = scmp.ne.s32.totalorder %s95, %s98
      %p107 = scmp.eq.s32.totalorder %s17, 1
      %p108 = por %p106, %p107
      %p109 = scmp.ne.s32.totalorder %s98, %s99
      %p110 = scmp.eq.s32.totalorder %s17, 0
      %p111 = por %p109, %p110
      %p112 = scmp.ne.s32.totalorder %s98, %s99
      %p113 = scmp.eq.s32.totalorder %s18, 1
      %p114 = por %p112, %p113
      %p116 = scmp.ne.s32.totalorder %s99, %s115
      %p117 = scmp.eq.s32.totalorder %s18, 0
      %p118 = por %p116, %p117
      %s119 = ssub.s32 %s19, %s38
      %s120 = ssub.s32 %s20, %s34
      %s121 = sor.u32 %s119, %s120
      %s122 = ssub.s32 %s21, %s30
      %s123 = sor.u32 %s121, %s122
      %p124 = scmp.eq.s32.totalorder %s123, 0
      %s126 = sadd.s32 %s125, 1
      %s127 = scalar_select %p124, %s125, %s126
      %p130 = pneg %p124
      %p131 = scmp.eq.s32.totalorder %s12, 1
      %p132 = por %p130, %p131
      %p133 = scmp.ne.s32.totalorder %s125, %s128
      %p134 = scmp.eq.s32.totalorder %s12, 0
      %p135 = por %p133, %p134
      %p136 = scmp.ne.s32.totalorder %s125, %s128
      %p137 = scmp.eq.s32.totalorder %s17, 1
      %p138 = por %p136, %p137
      %p139 = scmp.ne.s32.totalorder %s128, %s129
      %p140 = scmp.eq.s32.totalorder %s17, 0
      %p141 = por %p139, %p140
      %p142 = scmp.ne.s32.totalorder %s128, %s129
      %p143 = scmp.eq.s32.totalorder %s18, 1
      %p144 = por %p142, %p143
      %p146 = scmp.ne.s32.totalorder %s129, %s145
      %p147 = scmp.eq.s32.totalorder %s18, 0
      %p148 = por %p146, %p147
      %p149 = scmp.le.s32.totalorder 1, %s12
      %p150 = scmp.lt.s32.totalorder %s12, 3
      %p151 = pnand %p149, %p150
      %p152 = pneg %p151
      // Predicated region
      $region9: #{tpu_custom_call.1} parent=5 // pred_check
        _
      $region10: #{tpu_custom_call.1} parent=5 // pred_check_branch
        %154 = sbr.rel (%p151) target = $region12
      $region11: #{tpu_custom_call.1} parent=5 // pred_region
        %s155 = ssub.s32 %s12, 1
        // Predicated region
        $region13: #{tpu_custom_call.1} parent=11 // pred_check
          %p156 = pneg %p85
        $region14: #{tpu_custom_call.1} parent=11 // pred_check_branch
          %158 = sbr.rel (%p156) target = $region16
        $region15: #{tpu_custom_call.1} parent=11 // pred_region
          %s159 = smul.u32 2, %s23
          %p160 = scmp.lt.s32.totalorder %s159, 1
          %s161 = scalar_select %p160, %s159, 1
          %s162 = smul.addr %s161, 8
          %s163 = scalar_lea.vmem %s1, %s162
          %s164 = smul.u32 2, %s23
        $region16: #{tpu_custom_call.1} parent=11 // pred_fallthru
          _
        // Predicated region
        $region17: #{tpu_custom_call.1} parent=11 // pred_check
          %p165 = pneg %p111
        $region18: #{tpu_custom_call.1} parent=11 // pred_check_branch
          %167 = sbr.rel (%p165) target = $region20
        $region19: #{tpu_custom_call.1} parent=11 // pred_region
          %s168 = smul.u32 2, %s23
          %p169 = scmp.lt.s32.totalorder %s168, 1
          %s170 = scalar_select %p169, %s168, 1
          %s171 = smul.addr %s170, 8
          %s172 = scalar_lea.vmem %s2, %s171
          %s173 = smul.u32 2, %s23
        $region20: #{tpu_custom_call.1} parent=11 // pred_fallthru
          _
      $region12: #{tpu_custom_call.1} parent=5 // pred_fallthru
        _
      %p174 = scmp.lt.s32.totalorder %s12, 2
      // Predicated region
      $region21: #{tpu_custom_call.1} parent=5 // pred_check
        %p175 = pneg %p174
      $region22: #{tpu_custom_call.1} parent=5 // pred_check_branch
        %177 = sbr.rel (%p175) target = $region24
      $region23: #{tpu_custom_call.1} parent=5 // pred_region
        // Predicated region
        $region25: #{tpu_custom_call.1} parent=23 // pred_check
          %p178 = pneg %p53
        $region26: #{tpu_custom_call.1} parent=23 // pred_check_branch
          %180 = sbr.rel (%p178) target = $region28
        $region27: #{tpu_custom_call.1} parent=23 // pred_region
          %p181 = scmp.lt.s32.totalorder %s19, 1
          %s182 = scalar_select %p181, %s19, 1
          %p183 = scmp.lt.s32.totalorder %s21, 0
          %s184 = scalar_select %p183, %s21, 0
          %s185 = sadd.s32 %s184, %s182
          %s186 = smul.addr %s185, 8
          %s187 = scalar_lea.vmem %s0, %s186
        $region28: #{tpu_custom_call.1} parent=23 // pred_fallthru
          _
      $region24: #{tpu_custom_call.1} parent=5 // pred_fallthru
        _
      %p188 = scmp.le.s32.totalorder 1, %s12
      %p189 = scmp.lt.s32.totalorder %s12, 3
      %p190 = pnand %p188, %p189
      %p191 = pneg %p190
      // Predicated region
      $region29: #{tpu_custom_call.1} parent=5 // pred_check
        _
      $region30: #{tpu_custom_call.1} parent=5 // pred_check_branch
        %193 = sbr.rel (%p190) target = $region32
      $region31: #{tpu_custom_call.1} parent=5 // pred_region
        %s194 = ssub.s32 %s12, 1
        %p195 = scmp.lt.s32.totalorder %s22, 1
        %s196 = scalar_select %p195, %s22, 1
        %p197 = scmp.lt.s32.totalorder %s24, 0
        %s198 = scalar_select %p197, %s24, 0
        %s199 = sadd.s32 %s198, %s196
        %s200 = smul.addr %s199, 8
        %s201 = scalar_lea.vmem %s0, %s200
        %p202 = pneg %p59
        %p203 = pneg %p56
        %s204 = smul.u32 2, %s23
        %p205 = scmp.lt.s32.totalorder %s204, 1
        %s206 = scalar_select %p205, %s204, 1
        %s207 = smul.addr %s206, 8
        %s208 = scalar_lea.vmem %s1, %s207
        %p209 = pneg %p85
        %p210 = pneg %p82
        %s211 = smul.u32 2, %s23
        %p212 = scmp.lt.s32.totalorder %s211, 1
        %s213 = scalar_select %p212, %s211, 1
        %s214 = smul.addr %s213, 8
        %s215 = scalar_lea.vmem %s2, %s214
        %p216 = pneg %p111
        %p217 = pneg %p108
        %p218 = pneg %p141
        %p219 = pneg %p138
        %s220 = sand.u32 %s128, 1
        %s221 = scalar_lea.sflag [#allocation3], %s220
        %s222 = sand.u32 %s128, 1
        %s223 = smul.addr %s222, 16
        %s224 = scalar_lea.vmem [#allocation2], %s223
        %p225 = scmp.lt.s32.totalorder %s22, 1
        %s226 = scalar_select %p225, %s22, 1
        %p227 = scmp.lt.s32.totalorder %s24, 0
        %s228 = scalar_select %p227, %s24, 0
        %s229 = sadd.s32 %s228, %s226
        %s230 = smul.addr %s229, 8
        %s231 = scalar_lea.vmem %s0, %s230
        %s232 = smul.u32 2, %s23
        %p233 = scmp.lt.s32.totalorder %s232, 1
        %s234 = scalar_select %p233, %s232, 1
        %s235 = smul.addr %s234, 8
        %s236 = scalar_lea.vmem %s1, %s235
        %s237 = smul.u32 2, %s23
        %s238 = smul.u32 2, %s23
        %p239 = scmp.lt.s32.totalorder %s238, 1
        %s240 = scalar_select %p239, %s238, 1
        %s241 = smul.addr %s240, 8
        %s242 = scalar_lea.vmem %s2, %s241
        %s243 = smul.u32 2, %s23
        %s244 = smul.u32 2, %s23
        %v245 = vld [vmem:[%s231] sm:$0xff]
        %v246 = vld [vmem:[%s236] sm:$0xff]
        %v247 = vld [vmem:[%s236 + $0x8] sm:$0xff]
        %v248 = vld [vmem:[%s242] sm:$0xff]
        %v249 = vld [vmem:[%s242 + $0x8] sm:$0xff]
        %251 = vset.pattern.permute.xlu0 0
        %252 = vperm.xlu0 %251, %v248
        %v253 = vpop.permute.xlu0 %252
        %256 = vset.pattern.permute.xlu0 0
        %257 = vperm.xlu0 %256, %v249
        %v258 = vpop.permute.xlu0 %257
        %vm260 = vcmask 64512
        %v262 = vsel %vm260, %v246, 0
        %v265 = vsel %vm260, %v247, 0
        %267 = vmatpush.msra.mxu0 0.0
        %268 = vmatpush.msra.mxu0 0.0
        %269 = vmatpush.msra.mxu0 0.0
        %270 = vmatpush.msra.mxu0 0.0
        %271 = vmatpush.msra.mxu0 0.0
        %272 = vmatpush.msra.mxu0 0.0
        %273 = vmatpush.msra.mxu0 0.0
        %274 = vmatpush.msra.mxu0 0.0
        %275 = vmatpush.msra.mxu0 0.0
        %276 = vmatpush.msra.mxu0 0.0
        %277 = vmatpush.msra.mxu0 0.0
        %278 = vmatpush.msra.mxu0 0.0
        %279 = vmatpush.msra.mxu0 0.0
        %280 = vmatpush.msra.mxu0 0.0
        %281 = vmatpush.msra.mxu0 0.0
        %282 = vmatpush.msra.mxu0 %v245
        %283 = vmatmul.f32.gmra.mxu0 %v262
        %v284 = vpop.f32.mrf.mxu0
        %v285 = vadd.f32 %v253, %v284
        %286 = vmatmul.f32.gmra.mxu0 %v265
        %v287 = vpop.f32.mrf.mxu0
        %v288 = vadd.f32 %v258, %v287
        %289 = vdwg.mxu0
        %v290 = vmax.f32 %v285, 0.0
        %v291 = vmax.f32 %v288, 0.0
        %vm292 = vcmask 130048
        %293 = vst.msk [vmem:[%s224] sm:$0xff] %vm292, %v290
        %294 = vst.msk [vmem:[%s224 + $0x8] sm:$0xff] %vm292, %v291
        %s295 = sand.u32 %s128, 1
        %s296 = scalar_lea.sflag [#allocation3], %s295
        %s297 = sand.u32 %s128, 1
        %s298 = smul.addr %s297, 16
        %s299 = scalar_lea.vmem [#allocation2], %s298
        // Predicated region
        $region33: #{tpu_custom_call.1} parent=31 // pred_check
          %p300 = pneg %p138
        $region34: #{tpu_custom_call.1} parent=31 // pred_check_branch
          %302 = sbr.rel (%p300) target = $region36
        $region35: #{tpu_custom_call.1} parent=31 // pred_region
          %s303 = smul.u32 2, %s23
          %305 = vsyncadd %s296, 0
          %s306 = sadd.s32 %s24, %s303
          %s307 = smul.addr %s22, 2
          %s308 = sadd.s32 %s306, %s307
          %s309 = smul.addr %s308, 8
          %s310 = scalar_lea.hbm %s3, %s309
          %s311 = sshll.u32 %s299, 4
          %s312 = int_to_ptr.vmem [resolvable:$true] %s311
          %s313 = sshll.u32 %s310, 4
          %s314 = int_to_ptr.hbm [resolvable:$true] %s313
          %319 = dma.vmem_to_hbm [thread:$0]  %s312, 256, %s314, %s296, 128, 128, 8
        $region36: #{tpu_custom_call.1} parent=31 // pred_fallthru
          _
      $region32: #{tpu_custom_call.1} parent=5 // pred_fallthru
        _
      %p320 = scmp.le.s32.totalorder 2, %s12
      // Predicated region
      $region37: #{tpu_custom_call.1} parent=5 // pred_check
        %p321 = pneg %p320
      $region38: #{tpu_custom_call.1} parent=5 // pred_check_branch
        %323 = sbr.rel (%p321) target = $region40
      $region39: #{tpu_custom_call.1} parent=5 // pred_region
        %s324 = ssub.s32 %s12, 2
        // Predicated region
        $region41: #{tpu_custom_call.1} parent=39 // pred_check
          %p325 = pneg %p144
        $region42: #{tpu_custom_call.1} parent=39 // pred_check_branch
          %327 = sbr.rel (%p325) target = $region44
        $region43: #{tpu_custom_call.1} parent=39 // pred_region
          %s328 = sand.u32 %s129, 1
          %s329 = scalar_lea.sflag [#allocation3], %s328
          %s330 = sand.u32 %s129, 1
          %s331 = smul.addr %s330, 16
          %s332 = scalar_lea.vmem [#allocation2], %s331
          %334 = dma.done %s329, 256
        $region44: #{tpu_custom_call.1} parent=39 // pred_fallthru
          _
      $region40: #{tpu_custom_call.1} parent=5 // pred_fallthru
        _
    $region6: #{tpu_custom_call.1} parent=1 // loop_footer
      %s16 = sadd.s32 1, %s12
    $region7: #{tpu_custom_call.1} parent=1 // loop_footer_branch
      %11 = sbr.rel target = $region3
    $region8: #{tpu_custom_call.1} parent=1 // loop_exit
      _
    %335 = vsyncpa [#allocation3], 1
    %s336 = scalar_lea.sflag [#allocation3], 1
    %337 = vsyncpa %s336, 1

// kernel: tpu_custom_call.1
$region0: #{tpu_custom_call.1}
  #allocation0 [shape = 'u32[]', space=smem, size = 0x4, offset = 0x4, fixed_abs, tag = 'smem constant byte address 0x4 - core index']
  #allocation1 [shape = 'u32[72,128]{1,0:T(1,128)}', space=vmem, size = 0x9000, scoped, tag = 'internal scratch']
  %s0 = inlined_call_operand.vmem [shape: f32[2,8,16], index: 0, kind: input, shape index: {}]
  %s1 = inlined_call_operand.vmem [shape: f32[16,8], index: 1, kind: input, shape index: {}]
  %s2 = inlined_call_operand.vmem [shape: f32[16,1], index: 2, kind: input, shape index: {}]
  %s3 = inlined_call_operand.hbm [shape: f32[2,16,16], index: 3, kind: output, shape index: {}]
  %s4 = sld [smem:[#allocation0]]
  $region45: #{tpu_custom_call.1} parent=0
    _
  %s6 = ssub.s32 1, %s4
  %s7 = scalar_select 0, %s6, %s4
  $region1: #{tpu_custom_call.1} parent=0
    #allocation2 [shape = 'u8[16384]{0}', space=vmem, size = 0x4000, scoped, tag = 'output window, operand 0']
    #allocation3 [shape = 's32[2]{0}', space=sflag, size = 0x8, scoped, tag = 'scoped memory for tpu_custom_call.1']
    %8 = vsyncpa [#allocation3], 0
    %s9 = scalar_lea.sflag [#allocation3], 1
    %10 = vsyncpa %s9, 0
    loop: start=0, step=1, limit=4
    $region2: #{tpu_custom_call.1} parent=1 // loop_pre_header
      _
    $region3: #{tpu_custom_call.1} parent=1 // loop_header
      %s12 = sphi 0, %s16
      %p13 = scmp.ge.s32.totalorder %s12, 4
      %s19 = sphi 0, %s38
      %s20 = sphi 0, %s34
      %s21 = sphi 0, %s30
      %s22 = sphi 0, %s19
      %s23 = sphi 0, %s20
      %s24 = sphi 0, %s21
      %s25 = sphi 0, %s22
      %s26 = sphi 0, %s23
      %s27 = sphi 0, %s24
      %s43 = sphi 0, %s45
      %s46 = sphi 0, %s43
      %s47 = sphi 0, %s46
      %s63 = sphi 0, %s47
      %s69 = sphi 0, %s71
      %s72 = sphi 0, %s69
      %s73 = sphi 0, %s72
      %s89 = sphi 0, %s73
      %s95 = sphi 0, %s97
      %s98 = sphi 0, %s95
      %s99 = sphi 0, %s98
      %s115 = sphi 0, %s99
      %s125 = sphi 0, %s127
      %s128 = sphi 0, %s125
      %s129 = sphi 0, %s128
      %s145 = sphi 0, %s129
    $region4: #{tpu_custom_call.1} parent=1 // loop_header_branch
      %15 = sbr.rel (%p13) target = $region8
    $region5: #{tpu_custom_call.1} parent=1 // loop_body
      %s17 = ssub.s32 %s12, 1
      %s18 = ssub.s32 %s12, 2
      %s28 = sadd.s32 1, %s21
      %p29 = scmp.ge.s32.totalorder %s28, 1
      %s30 = scalar_select %p29, 0, %s28
      %s31 = sadd.s32 1, %s20
      %s32 = scalar_select %p29, %s31, %s20
      %p33 = scmp.ge.s32.totalorder %s32, 1
      %s34 = scalar_select %p33, 0, %s32
      %s35 = sadd.s32 1, %s19
      %s36 = scalar_select %p33, %s35, %s19
      %p37 = scmp.ge.s32.totalorder %s36, 2
      %s38 = scalar_select %p37, 0, %s36
      %s39 = ssub.s32 %s19, %s38
      %s40 = ssub.s32 %s21, %s30
      %s41 = sor.u32 %s39, %s40
      %p42 = scmp.eq.s32.totalorder %s41, 0
      %s44 = sadd.s32 %s43, 1
      %s45 = scalar_select %p42, %s43, %s44
      %p48 = pneg %p42
      %p49 = scmp.eq.s32.totalorder %s12, 1
      %p50 = por %p48, %p49
      %p51 = scmp.ne.s32.totalorder %s43, %s46
      %p52 = scmp.eq.s32.totalorder %s12, 0
      %p53 = por %p51, %p52
      %p54 = scmp.ne.s32.totalorder %s43, %s46
      %p55 = scmp.eq.s32.totalorder %s17, 1
      %p56 = por %p54, %p55
      %p57 = scmp.ne.s32.totalorder %s46, %s47
      %p58 = scmp.eq.s32.totalorder %s17, 0
      %p59 = por %p57, %p58
      %p60 = scmp.ne.s32.totalorder %s46, %s47
      %p61 = scmp.eq.s32.totalorder %s18, 1
      %p62 = por %p60, %p61
      %p64 = scmp.ne.s32.totalorder %s47, %s63
      %p65 = scmp.eq.s32.totalorder %s18, 0
      %p66 = por %p64, %p65
      %s67 = ssub.s32 %s20, %s34
      %p68 = scmp.eq.s32.totalorder %s67, 0
      %s70 = sadd.s32 %s69, 1
      %s71 = scalar_select %p68, %s69, %s70
      %p74 = pneg %p68
      %p75 = scmp.eq.s32.totalorder %s12, 1
      %p76 = por %p74, %p75
      %p77 = scmp.ne.s32.totalorder %s69, %s72
      %p78 = scmp.eq.s32.totalorder %s12, 0
      %p79 = por %p77, %p78
      %p80 = scmp.ne.s32.totalorder %s69, %s72
      %p81 = scmp.eq.s32.totalorder %s17, 1
      %p82 = por %p80, %p81
      %p83 = scmp.ne.s32.totalorder %s72, %s73
      %p84 = scmp.eq.s32.totalorder %s17, 0
      %p85 = por %p83, %p84
      %p86 = scmp.ne.s32.totalorder %s72, %s73
      %p87 = scmp.eq.s32.totalorder %s18, 1
      %p88 = por %p86, %p87
      %p90 = scmp.ne.s32.totalorder %s73, %s89
      %p91 = scmp.eq.s32.totalorder %s18, 0
      %p92 = por %p90, %p91
      %s93 = ssub.s32 %s20, %s34
      %p94 = scmp.eq.s32.totalorder %s93, 0
      %s96 = sadd.s32 %s95, 1
      %s97 = scalar_select %p94, %s95, %s96
      %p100 = pneg %p94
      %p101 = scmp.eq.s32.totalorder %s12, 1
      %p102 = por %p100, %p101
      %p103 = scmp.ne.s32.totalorder %s95, %s98
      %p104 = scmp.eq.s32.totalorder %s12, 0
      %p105 = por %p103, %p104
      %p106 = scmp.ne.s32.totalorder %s95, %s98
      %p107 = scmp.eq.s32.totalorder %s17, 1
      %p108 = por %p106, %p107
      %p109 = scmp.ne.s32.totalorder %s98, %s99
      %p110 = scmp.eq.s32.totalorder %s17, 0
      %p111 = por %p109, %p110
      %p112 = scmp.ne.s32.totalorder %s98, %s99
      %p113 = scmp.eq.s32.totalorder %s18, 1
      %p114 = por %p112, %p113
      %p116 = scmp.ne.s32.totalorder %s99, %s115
      %p117 = scmp.eq.s32.totalorder %s18, 0
      %p118 = por %p116, %p117
      %s119 = ssub.s32 %s19, %s38
      %s120 = ssub.s32 %s20, %s34
      %s121 = sor.u32 %s119, %s120
      %s122 = ssub.s32 %s21, %s30
      %s123 = sor.u32 %s121, %s122
      %p124 = scmp.eq.s32.totalorder %s123, 0
      %s126 = sadd.s32 %s125, 1
      %s127 = scalar_select %p124, %s125, %s126
      %p130 = pneg %p124
      %p131 = scmp.eq.s32.totalorder %s12, 1
      %p132 = por %p130, %p131
      %p133 = scmp.ne.s32.totalorder %s125, %s128
      %p134 = scmp.eq.s32.totalorder %s12, 0
      %p135 = por %p133, %p134
      %p136 = scmp.ne.s32.totalorder %s125, %s128
      %p137 = scmp.eq.s32.totalorder %s17, 1
      %p138 = por %p136, %p137
      %p139 = scmp.ne.s32.totalorder %s128, %s129
      %p140 = scmp.eq.s32.totalorder %s17, 0
      %p141 = por %p139, %p140
      %p142 = scmp.ne.s32.totalorder %s128, %s129
      %p143 = scmp.eq.s32.totalorder %s18, 1
      %p144 = por %p142, %p143
      %p146 = scmp.ne.s32.totalorder %s129, %s145
      %p147 = scmp.eq.s32.totalorder %s18, 0
      %p148 = por %p146, %p147
      %p149 = scmp.le.s32.totalorder 1, %s12
      %p150 = scmp.lt.s32.totalorder %s12, 3
      %p151 = pnand %p149, %p150
      %p152 = pneg %p151
      // Predicated region
      $region9: #{tpu_custom_call.1} parent=5 // pred_check
        _
      $region10: #{tpu_custom_call.1} parent=5 // pred_check_branch
        %154 = sbr.rel (%p151) target = $region12
      $region11: #{tpu_custom_call.1} parent=5 // pred_region
        %s155 = ssub.s32 %s12, 1
        // Predicated region
        $region13: #{tpu_custom_call.1} parent=11 // pred_check
          %p156 = pneg %p85
        $region14: #{tpu_custom_call.1} parent=11 // pred_check_branch
          %158 = sbr.rel (%p156) target = $region16
        $region15: #{tpu_custom_call.1} parent=11 // pred_region
          %s159 = smul.u32 2, %s23
          %p160 = scmp.lt.s32.totalorder %s159, 1
          %s161 = scalar_select %p160, %s159, 1
          %s162 = smul.addr %s161, 8
          %s163 = scalar_lea.vmem %s1, %s162
          %s164 = smul.u32 2, %s23
        $region16: #{tpu_custom_call.1} parent=11 // pred_fallthru
          _
        // Predicated region
        $region17: #{tpu_custom_call.1} parent=11 // pred_check
          %p165 = pneg %p111
        $region18: #{tpu_custom_call.1} parent=11 // pred_check_branch
          %167 = sbr.rel (%p165) target = $region20
        $region19: #{tpu_custom_call.1} parent=11 // pred_region
          %s168 = smul.u32 2, %s23
          %p169 = scmp.lt.s32.totalorder %s168, 1
          %s170 = scalar_select %p169, %s168, 1
          %s171 = smul.addr %s170, 8
          %s172 = scalar_lea.vmem %s2, %s171
          %s173 = smul.u32 2, %s23
        $region20: #{tpu_custom_call.1} parent=11 // pred_fallthru
          _
      $region12: #{tpu_custom_call.1} parent=5 // pred_fallthru
        _
      %p174 = scmp.lt.s32.totalorder %s12, 2
      // Predicated region
      $region21: #{tpu_custom_call.1} parent=5 // pred_check
        %p175 = pneg %p174
      $region22: #{tpu_custom_call.1} parent=5 // pred_check_branch
        %177 = sbr.rel (%p175) target = $region24
      $region23: #{tpu_custom_call.1} parent=5 // pred_region
        // Predicated region
        $region25: #{tpu_custom_call.1} parent=23 // pred_check
          %p178 = pneg %p53
        $region26: #{tpu_custom_call.1} parent=23 // pred_check_branch
          %180 = sbr.rel (%p178) target = $region28
        $region27: #{tpu_custom_call.1} parent=23 // pred_region
          %p181 = scmp.lt.s32.totalorder %s19, 1
          %s182 = scalar_select %p181, %s19, 1
          %p183 = scmp.lt.s32.totalorder %s21, 0
          %s184 = scalar_select %p183, %s21, 0
          %s185 = sadd.s32 %s184, %s182
          %s186 = smul.addr %s185, 8
          %s187 = scalar_lea.vmem %s0, %s186
        $region28: #{tpu_custom_call.1} parent=23 // pred_fallthru
          _
      $region24: #{tpu_custom_call.1} parent=5 // pred_fallthru
        _
      %p188 = scmp.le.s32.totalorder 1, %s12
      %p189 = scmp.lt.s32.totalorder %s12, 3
      %p190 = pnand %p188, %p189
      %p191 = pneg %p190
      // Predicated region
      $region29: #{tpu_custom_call.1} parent=5 // pred_check
        _
      $region30: #{tpu_custom_call.1} parent=5 // pred_check_branch
        %193 = sbr.rel (%p190) target = $region32
      $region31: #{tpu_custom_call.1} parent=5 // pred_region
        %s194 = ssub.s32 %s12, 1
        %p195 = scmp.lt.s32.totalorder %s22, 1
        %s196 = scalar_select %p195, %s22, 1
        %p197 = scmp.lt.s32.totalorder %s24, 0
        %s198 = scalar_select %p197, %s24, 0
        %s199 = sadd.s32 %s198, %s196
        %s200 = smul.addr %s199, 8
        %s201 = scalar_lea.vmem %s0, %s200
        %p202 = pneg %p59
        %p203 = pneg %p56
        %s204 = smul.u32 2, %s23
        %p205 = scmp.lt.s32.totalorder %s204, 1
        %s206 = scalar_select %p205, %s204, 1
        %s207 = smul.addr %s206, 8
        %s208 = scalar_lea.vmem %s1, %s207
        %p209 = pneg %p85
        %p210 = pneg %p82
        %s211 = smul.u32 2, %s23
        %p212 = scmp.lt.s32.totalorder %s211, 1
        %s213 = scalar_select %p212, %s211, 1
        %s214 = smul.addr %s213, 8
        %s215 = scalar_lea.vmem %s2, %s214
        %p216 = pneg %p111
        %p217 = pneg %p108
        %p218 = pneg %p141
        %p219 = pneg %p138
        %s220 = sand.u32 %s128, 1
        %s221 = scalar_lea.sflag [#allocation3], %s220
        %s222 = sand.u32 %s128, 1
        %s223 = smul.addr %s222, 16
        %s224 = scalar_lea.vmem [#allocation2], %s223
        %p225 = scmp.lt.s32.totalorder %s22, 1
        %s226 = scalar_select %p225, %s22, 1
        %p227 = scmp.lt.s32.totalorder %s24, 0
        %s228 = scalar_select %p227, %s24, 0
        %s229 = sadd.s32 %s228, %s226
        %s230 = smul.addr %s229, 8
        %s231 = scalar_lea.vmem %s0, %s230
        %s232 = smul.u32 2, %s23
        %p233 = scmp.lt.s32.totalorder %s232, 1
        %s234 = scalar_select %p233, %s232, 1
        %s235 = smul.addr %s234, 8
        %s236 = scalar_lea.vmem %s1, %s235
        %s237 = smul.u32 2, %s23
        %s238 = smul.u32 2, %s23
        %p239 = scmp.lt.s32.totalorder %s238, 1
        %s240 = scalar_select %p239, %s238, 1
        %s241 = smul.addr %s240, 8
        %s242 = scalar_lea.vmem %s2, %s241
        %s243 = smul.u32 2, %s23
        %s244 = smul.u32 2, %s23
        %v245 = vld [vmem:[%s231] sm:$0xff]
        %v246 = vld [vmem:[%s236] sm:$0xff]
        %v247 = vld [vmem:[%s236 + $0x8] sm:$0xff]
        %v248 = vld [vmem:[%s242] sm:$0xff]
        %v249 = vld [vmem:[%s242 + $0x8] sm:$0xff]
        %251 = vset.pattern.permute.xlu0 0
        %252 = vperm.xlu0 %251, %v248
        %v253 = vpop.permute.xlu0 %252
        %256 = vset.pattern.permute.xlu0 0
        %257 = vperm.xlu0 %256, %v249
        %v258 = vpop.permute.xlu0 %257
        %vm260 = vcmask 64512
        %v262 = vsel %vm260, %v246, 0
        %v265 = vsel %vm260, %v247, 0
        %267 = vmatpush.msra.mxu0 0.0
        %268 = vmatpush.msra.mxu0 0.0
        %269 = vmatpush.msra.mxu0 0.0
        %270 = vmatpush.msra.mxu0 0.0
        %271 = vmatpush.msra.mxu0 0.0
        %272 = vmatpush.msra.mxu0 0.0
        %273 = vmatpush.msra.mxu0 0.0
        %274 = vmatpush.msra.mxu0 0.0
        %275 = vmatpush.msra.mxu0 0.0
        %276 = vmatpush.msra.mxu0 0.0
        %277 = vmatpush.msra.mxu0 0.0
        %278 = vmatpush.msra.mxu0 0.0
        %279 = vmatpush.msra.mxu0 0.0
        %280 = vmatpush.msra.mxu0 0.0
        %281 = vmatpush.msra.mxu0 0.0
        %282 = vmatpush.msra.mxu0 %v245
        %283 = vmatmul.f32.gmra.mxu0 %v262
        %v284 = vpop.f32.mrf.mxu0
        %v285 = vadd.f32 %v253, %v284
        %286 = vmatmul.f32.gmra.mxu0 %v265
        %v287 = vpop.f32.mrf.mxu0
        %v288 = vadd.f32 %v258, %v287
        %289 = vdwg.mxu0
        %v290 = vmax.f32 %v285, 0.0
        %v291 = vmax.f32 %v288, 0.0
        %vm292 = vcmask 130048
        %293 = vst.msk [vmem:[%s224] sm:$0xff] %vm292, %v290
        %294 = vst.msk [vmem:[%s224 + $0x8] sm:$0xff] %vm292, %v291
        %s295 = sand.u32 %s128, 1
        %s296 = scalar_lea.sflag [#allocation3], %s295
        %s297 = sand.u32 %s128, 1
        %s298 = smul.addr %s297, 16
        %s299 = scalar_lea.vmem [#allocation2], %s298
        // Predicated region
        $region33: #{tpu_custom_call.1} parent=31 // pred_check
          %p300 = pneg %p138
        $region34: #{tpu_custom_call.1} parent=31 // pred_check_branch
          %302 = sbr.rel (%p300) target = $region36
        $region35: #{tpu_custom_call.1} parent=31 // pred_region
          %s303 = smul.u32 2, %s23
          %305 = vsyncadd %s296, 0
          %s306 = sadd.s32 %s24, %s303
          %s307 = smul.addr %s22, 2
          %s308 = sadd.s32 %s306, %s307
          %s309 = smul.addr %s308, 8
          %s310 = scalar_lea.hbm %s3, %s309
          %s311 = sshll.u32 %s299, 4
          %s312 = int_to_ptr.vmem [resolvable:$true] %s311
          %s313 = sshll.u32 %s310, 4
          %s314 = int_to_ptr.hbm [resolvable:$true] %s313
          %319 = dma.vmem_to_hbm [thread:$0]  %s312, 256, %s314, %s296, 128, 128, 8
        $region36: #{tpu_custom_call.1} parent=31 // pred_fallthru
          _
      $region32: #{tpu_custom_call.1} parent=5 // pred_fallthru
        _
      %p320 = scmp.le.s32.totalorder 2, %s12
      // Predicated region
      $region37: #{tpu_custom_call.1} parent=5 // pred_check
        %p321 = pneg %p320
      $region38: #{tpu_custom_call.1} parent=5 // pred_check_branch
        %323 = sbr.rel (%p321) target = $region40
      $region39: #{tpu_custom_call.1} parent=5 // pred_region
        %s324 = ssub.s32 %s12, 2
        // Predicated region
        $region41: #{tpu_custom_call.1} parent=39 // pred_check
          %p325 = pneg %p144
        $region42: #{tpu_custom_call.1} parent=39 // pred_check_branch
          %327 = sbr.rel (%p325) target = $region44
        $region43: #{tpu_custom_call.1} parent=39 // pred_region
          %s328 = sand.u32 %s129, 1
          %s329 = scalar_lea.sflag [#allocation3], %s328
          %s330 = sand.u32 %s129, 1
          %s331 = smul.addr %s330, 16
          %s332 = scalar_lea.vmem [#allocation2], %s331
          %334 = dma.done %s329, 256
        $region44: #{tpu_custom_call.1} parent=39 // pred_fallthru
          _
      $region40: #{tpu_custom_call.1} parent=5 // pred_fallthru
        _
    $region6: #{tpu_custom_call.1} parent=1 // loop_footer
      %s16 = sadd.s32 1, %s12
    $region7: #{tpu_custom_call.1} parent=1 // loop_footer_branch
      %11 = sbr.rel target = $region3
    $region8: #{tpu_custom_call.1} parent=1 // loop_exit
      _
    %335 = vsyncpa [#allocation3], 1
    %s336 = scalar_lea.sflag [#allocation3], 1
    %337 = vsyncpa %s336, 1

</llo_original>
